<compile_context>
chip_gen: v5e
topology: v5e:2x2
jax: 0.10.0
libtpu: 0.0.40
codegen_flags: <defaults>
</compile_context>

<pallas_src>
from functools import partial
from typing import NamedTuple

import jax
import jax.numpy as jnp
from jax import lax
from jax.experimental import pallas as pl
from jax.experimental.pallas import tpu as pltpu


def _round_up(x, m):
    return ((x + m - 1) // m) * m


def _gelu(x, approximate=False):
    if approximate:
        # tanh-approx routes the transcendental to the EUP (cheaper VALU on
        # v6e/v7x) but deviates slightly from torch's exact erf GELU.
        return jax.nn.gelu(x, approximate=True)
    # torch nn.GELU() default: exact erf formulation (f32 on the VPU).
    return 0.5 * x * (1.0 + lax.erf(x * jnp.float32(0.7071067811865476)))


# ----------------------------------------------------------------------------
# Kernel
# ----------------------------------------------------------------------------
def _net_kernel(x_ref, w1_ref, b1_ref, w2_ref, b2_ref, wf_ref, bf_ref, o_ref,
                *, multitask: bool, approximate_gelu: bool):
    # x is streamed as bf16: feed the MXU LHS directly from the ref, upcast
    # once to f32 only for the skip add.
    x_bf = x_ref[...]
    x_f32 = x_bf.astype(jnp.float32)

    # fc1 -> dropout(identity, eval) -> GELU -> skip add
    # TODO(synk): training-mode dropout (p=0.2) not implemented; eval semantics.
    h = jnp.dot(x_bf, w1_ref[...], preferred_element_type=jnp.float32) + b1_ref[...]
    h = _gelu(h, approximate_gelu) + x_f32

    # fc2 -> dropout(identity, eval) -> GELU -> skip add
    z = jnp.dot(h.astype(jnp.bfloat16), w2_ref[...],
                preferred_element_type=jnp.float32) + b2_ref[...]
    z = _gelu(z, approximate_gelu) + h

    # final linear (Dp -> OUT_PAD, lane-dense; real columns are [:n_output])
    y = jnp.dot(z.astype(jnp.bfloat16), wf_ref[...],
                preferred_element_type=jnp.float32) + bf_ref[...]

    if multitask:
        y = jax.nn.sigmoid(y)

    o_ref[...] = y.astype(o_ref.dtype)


# ----------------------------------------------------------------------------
# One-time parameter preparation (hoisted out of the per-call path)
# ----------------------------------------------------------------------------
class PreparedParams(NamedTuple):
    w1: jax.Array   # (Dp, Dp)       bf16
    b1: jax.Array   # (1, Dp)        f32
    w2: jax.Array   # (Dp, Dp)       bf16
    b2: jax.Array   # (1, Dp)        f32
    wf: jax.Array   # (Dp, OUT_PAD)  bf16
    bf: jax.Array   # (1, OUT_PAD)   f32
    embed_dim: int
    n_output: int


def prepare_params(params):
    """Pad to lane/MXU friendly sizes and cast weights to bf16 ONCE."""
    w1, b1, w2, b2, wf, bf = params
    D = w1.shape[0]
    n_out = wf.shape[1]
    Dp = _round_up(D, 128)
    out_pad = _round_up(n_out, 128)

    w1_p = jnp.zeros((Dp, Dp), jnp.bfloat16).at[:D, :D].set(w1.astype(jnp.bfloat16))
    w2_p = jnp.zeros((Dp, Dp), jnp.bfloat16).at[:D, :D].set(w2.astype(jnp.bfloat16))
    wf_p = jnp.zeros((Dp, out_pad), jnp.bfloat16).at[:D, :n_out].set(wf.astype(jnp.bfloat16))
    b1_p = jnp.zeros((1, Dp), jnp.float32).at[0, :D].set(b1.astype(jnp.float32))
    b2_p = jnp.zeros((1, Dp), jnp.float32).at[0, :D].set(b2.astype(jnp.float32))
    bf_p = jnp.zeros((1, out_pad), jnp.float32).at[0, :n_out].set(bf.astype(jnp.float32))
    return PreparedParams(w1_p, b1_p, w2_p, b2_p, wf_p, bf_p, D, n_out)


def _choose_batch_tile(B, batch_tile, sublane=16):
    """Batch tile: multiple of 16 (bf16 sublane packing).  Prefer >=2 grid
    steps so the 'parallel' batch axis can shard across v7x's two cores."""
    batch_tile = max(_round_up(batch_tile, sublane), sublane)
    if B <= sublane:
        return sublane
    tb = min(batch_tile, _round_up(B, sublane))
    if _round_up(B, tb) // tb < 2:
        tb = max(_round_up((B + 1) // 2, sublane), sublane)
    return tb


# ----------------------------------------------------------------------------
# Per-call forward
# ----------------------------------------------------------------------------
def net_forward(smiles_emb, prepared: PreparedParams, multitask=False,
                batch_tile=256, approximate_gelu=False):
    """Pallas-fused forward of Net. smiles_emb: (B, D)."""
    B, D = smiles_emb.shape
    assert D == prepared.embed_dim, (D, prepared.embed_dim)
    Dp = prepared.w1.shape[0]
    out_pad = prepared.wf.shape[1]
    n_out = prepared.n_output
    out_dtype = smiles_emb.dtype

    TB = _choose_batch_tile(B, batch_tile)
    B_pad = _round_up(B, TB)
    nb = B_pad // TB

    # Only x is padded/cast per call; skip even that when already aligned.
    if B_pad == B and Dp == D and smiles_emb.dtype == jnp.bfloat16:
        x_p = smiles_emb
    else:
        x_p = jnp.zeros((B_pad, Dp), jnp.bfloat16).at[:B, :D].set(
            smiles_emb.astype(jnp.bfloat16))

    # ---- VMEM / cost bookkeeping -------------------------------------------
    weight_bytes = (prepared.w1.size + prepared.w2.size + prepared.wf.size) * 2  # bf16
    bias_bytes = (prepared.b1.size + prepared.b2.size + prepared.bf.size) * 4    # f32
    # weights/biases single-buffered residents; x/out tiles double-buffered
    tile_bytes = 2 * (TB * Dp * 2 + TB * out_pad * out_dtype.itemsize)
    # in-kernel temporaries: x_f32, h, z (f32) + two bf16 casts + y (f32)
    interm_bytes = 3 * TB * Dp * 4 + 2 * TB * Dp * 2 + TB * out_pad * 4
    vmem_needed = weight_bytes + bias_bytes + tile_bytes + interm_bytes + (1 << 20)
    try:
        physical_vmem = int(pltpu.get_tpu_info().vmem_capacity_bytes)
    except Exception:
        physical_vmem = 64 * 1024 * 1024  # conservative (v7x per-TC VMEM)
    # TODO(synk): if vmem_needed exceeds physical VMEM (very large D), fall back
    # to a K-tiled reduction grid instead of keeping whole weights resident.
    vmem_limit = int(min(max(vmem_needed, 32 * 1024 * 1024), physical_vmem))

    cost = pl.CostEstimate(
        flops=2 * B_pad * Dp * Dp * 2 + 2 * B_pad * Dp * out_pad,
        transcendentals=2 * B_pad * Dp,
        bytes_accessed=(x_p.size * 2 + weight_bytes + bias_bytes
                        + B_pad * out_pad * out_dtype.itemsize),
    )

    def build(single_buffer_weights):
        if single_buffer_weights:
            resident = lambda shape: pl.BlockSpec(
                shape, lambda i: (0, 0), pipeline_mode=pl.Buffered(1))
        else:
            resident = lambda shape: pl.BlockSpec(shape, lambda i: (0, 0))
        return pl.pallas_call(
            partial(_net_kernel, multitask=multitask,
                    approximate_gelu=approximate_gelu),
            out_shape=jax.ShapeDtypeStruct((B_pad, out_pad), out_dtype),
            grid_spec=pltpu.PrefetchScalarGridSpec(
                num_scalar_prefetch=0,
                grid=(nb,),
                in_specs=[
                    pl.BlockSpec((TB, Dp), lambda i: (i, 0)),   # x (bf16, streamed)
                    resident((Dp, Dp)),                          # W1 bf16
                    resident((1, Dp)),                           # b1 f32
                    resident((Dp, Dp)),                          # W2 bf16
                    resident((1, Dp)),                           # b2 f32
                    resident((Dp, out_pad)),                     # Wf bf16
                    resident((1, out_pad)),                      # bf f32
                ],
                out_specs=pl.BlockSpec((TB, out_pad), lambda i: (i, 0)),
            ),
            compiler_params=pltpu.CompilerParams(
                dimension_semantics=("parallel",),
                vmem_limit_bytes=vmem_limit,
            ),
            cost_estimate=cost,
        )

    args = (x_p, prepared.w1, prepared.b1, prepared.w2, prepared.b2,
            prepared.wf, prepared.bf)
    try:
        out_p = build(single_buffer_weights=True)(*args)
    except Exception:
        # Fallback if this Pallas build rejects pipeline_mode on BlockSpec.
        out_p = build(single_buffer_weights=False)(*args)

    return out_p[:B, :n_out]


# ----------------------------------------------------------------------------
# Synthetic params + plain-JAX reference
# ----------------------------------------------------------------------------
def init_params(key, smiles_embed_dim, n_output=1):
    """Deterministic synthetic parameters with torch-Linear-like scaling."""
    D = smiles_embed_dim
    k = jax.random.split(key, 6)
    lim = 1.0 / jnp.sqrt(D)
    w1 = jax.random.uniform(k[0], (D, D), jnp.float32, -lim, lim)
    b1 = jax.random.uniform(k[1], (D,), jnp.float32, -lim, lim)
    w2 = jax.random.uniform(k[2], (D, D), jnp.float32, -lim, lim)
    b2 = jax.random.uniform(k[3], (D,), jnp.float32, -lim, lim)
    wf = jax.random.uniform(k[4], (D, n_output), jnp.float32, -lim, lim)
    bf = jax.random.uniform(k[5], (n_output,), jnp.float32, -lim, lim)
    return (w1, b1, w2, b2, wf, bf)


def _reference_forward(x, params, multitask=False):
    """Plain-JAX f32 reference (mirrors the PyTorch forward in eval mode)."""
    w1, b1, w2, b2, wf, bf = params
    h = _gelu(x @ w1 + b1) + x
    z = _gelu(h @ w2 + b2) + h
    y = z @ wf + bf
    return jax.nn.sigmoid(y) if multitask else y


if __name__ == "__main__":
    key = jax.random.PRNGKey(0)
    k_x, k_p = jax.random.split(key)

    B, D, n_output = 8, 32, 1
    smiles_emb = jax.random.normal(k_x, (B, D), jnp.float32)
    params = init_params(k_p, D, n_output)
    prepared = prepare_params(params)      # one-time weight prep (hoisted)

    out = jax.block_until_ready(net_forward(smiles_emb, prepared, multitask=False))
    ref = _reference_forward(smiles_emb, params, multitask=False)
    assert out.shape == (B, n_output), out.shape
    # bf16 MXU operands + bf16-streamed activations, f32 accumulation: compare
    # against the f32 reference with a loose tolerance.
    assert jnp.allclose(out, ref, atol=5e-2, rtol=5e-2), (out, ref)

    # also exercise the multitask (sigmoid) path
    out_mt = jax.block_until_ready(net_forward(smiles_emb, prepared, multitask=True))
    ref_mt = _reference_forward(smiles_emb, params, multitask=True)
    assert out_mt.shape == (B, n_output), out_mt.shape
    assert jnp.allclose(out_mt, ref_mt, atol=5e-2, rtol=5e-2), (out_mt, ref_mt)

    print("KERNEL_OK")
</pallas_src>

<mosaic_0001>
module attributes {stable_mosaic.version = 11 : i64} {
  func.func @_net_kernel(%arg0: i32, %arg1: memref<16x128xbf16, #tpu.memory_space<vmem>>, %arg2: memref<128x128xbf16, #tpu.memory_space<vmem>>, %arg3: memref<1x128xf32, #tpu.memory_space<vmem>>, %arg4: memref<128x128xbf16, #tpu.memory_space<vmem>>, %arg5: memref<1x128xf32, #tpu.memory_space<vmem>>, %arg6: memref<128x128xbf16, #tpu.memory_space<vmem>>, %arg7: memref<1x128xf32, #tpu.memory_space<vmem>>, %arg8: memref<16x128xf32, #tpu.memory_space<vmem>>) attributes {dimension_semantics = [#tpu.dimension_semantics<parallel>], iteration_bounds = array<i64: 1>, scalar_prefetch = 0 : i64, scratch_operands = 0 : i64, tpu.core_type = #tpu.core_type<tc>, window_params = [{transform_indices = @transform_0, window_bounds = array<i64: 16, 128>}, {pipeline_mode = #tpu.pipeline_mode<synchronous>, transform_indices = @transform_1, window_bounds = array<i64: 128, 128>}, {pipeline_mode = #tpu.pipeline_mode<synchronous>, transform_indices = @transform_2, window_bounds = array<i64: 1, 128>}, {pipeline_mode = #tpu.pipeline_mode<synchronous>, transform_indices = @transform_3, window_bounds = array<i64: 128, 128>}, {pipeline_mode = #tpu.pipeline_mode<synchronous>, transform_indices = @transform_4, window_bounds = array<i64: 1, 128>}, {pipeline_mode = #tpu.pipeline_mode<synchronous>, transform_indices = @transform_5, window_bounds = array<i64: 128, 128>}, {pipeline_mode = #tpu.pipeline_mode<synchronous>, transform_indices = @transform_6, window_bounds = array<i64: 1, 128>}, {transform_indices = @transform_7, window_bounds = array<i64: 16, 128>}]} {
    %c0 = arith.constant 0 : index
    %c0_0 = arith.constant 0 : index
    %0 = vector.load %arg1[%c0, %c0_0] : memref<16x128xbf16, #tpu.memory_space<vmem>>, vector<16x128xbf16>
    %1 = arith.extf %0 : vector<16x128xbf16> to vector<16x128xf32>
    %c0_1 = arith.constant 0 : index
    %c0_2 = arith.constant 0 : index
    %2 = vector.load %arg2[%c0_1, %c0_2] : memref<128x128xbf16, #tpu.memory_space<vmem>>, vector<128x128xbf16>
    %cst = arith.constant dense<0.000000e+00> : vector<16x128xf32>
    %3 = tpu.matmul %0, %2, %cst {dimension_numbers = #tpu.dot_dimension_numbers<[1], [0], [0], [1], [0, 0, 1, 1], [], []>} : vector<16x128xbf16>, vector<128x128xbf16>, vector<16x128xf32> -> vector<16x128xf32>
    %c0_3 = arith.constant 0 : index
    %c0_4 = arith.constant 0 : index
    %4 = vector.load %arg3[%c0_3, %c0_4] : memref<1x128xf32, #tpu.memory_space<vmem>>, vector<1x128xf32>
    %5 = vector.broadcast %4 : vector<1x128xf32> to vector<16x128xf32>
    %6 = arith.addf %3, %5 : vector<16x128xf32>
    %cst_5 = arith.constant 5.000000e-01 : f32
    %7 = vector.broadcast %cst_5 : f32 to vector<16x128xf32>
    %8 = arith.mulf %7, %6 : vector<16x128xf32>
    %cst_6 = arith.constant 0.707106769 : f32
    %9 = vector.broadcast %cst_6 : f32 to vector<16x128xf32>
    %10 = arith.mulf %6, %9 : vector<16x128xf32>
    %11 = math.erf %10 : vector<16x128xf32>
    %cst_7 = arith.constant 1.000000e+00 : f32
    %12 = vector.broadcast %cst_7 : f32 to vector<16x128xf32>
    %13 = arith.addf %12, %11 : vector<16x128xf32>
    %14 = arith.mulf %8, %13 : vector<16x128xf32>
    %15 = arith.addf %14, %1 : vector<16x128xf32>
    %16 = arith.truncf %15 : vector<16x128xf32> to vector<16x128xbf16>
    %c0_8 = arith.constant 0 : index
    %c0_9 = arith.constant 0 : index
    %17 = vector.load %arg4[%c0_8, %c0_9] : memref<128x128xbf16, #tpu.memory_space<vmem>>, vector<128x128xbf16>
    %cst_10 = arith.constant dense<0.000000e+00> : vector<16x128xf32>
    %18 = tpu.matmul %16, %17, %cst_10 {dimension_numbers = #tpu.dot_dimension_numbers<[1], [0], [0], [1], [0, 0, 1, 1], [], []>} : vector<16x128xbf16>, vector<128x128xbf16>, vector<16x128xf32> -> vector<16x128xf32>
    %c0_11 = arith.constant 0 : index
    %c0_12 = arith.constant 0 : index
    %19 = vector.load %arg5[%c0_11, %c0_12] : memref<1x128xf32, #tpu.memory_space<vmem>>, vector<1x128xf32>
    %20 = vector.broadcast %19 : vector<1x128xf32> to vector<16x128xf32>
    %21 = arith.addf %18, %20 : vector<16x128xf32>
    %cst_13 = arith.constant 5.000000e-01 : f32
    %22 = vector.broadcast %cst_13 : f32 to vector<16x128xf32>
    %23 = arith.mulf %22, %21 : vector<16x128xf32>
    %cst_14 = arith.constant 0.707106769 : f32
    %24 = vector.broadcast %cst_14 : f32 to vector<16x128xf32>
    %25 = arith.mulf %21, %24 : vector<16x128xf32>
    %26 = math.erf %25 : vector<16x128xf32>
    %cst_15 = arith.constant 1.000000e+00 : f32
    %27 = vector.broadcast %cst_15 : f32 to vector<16x128xf32>
    %28 = arith.addf %27, %26 : vector<16x128xf32>
    %29 = arith.mulf %23, %28 : vector<16x128xf32>
    %30 = arith.addf %29, %15 : vector<16x128xf32>
    %31 = arith.truncf %30 : vector<16x128xf32> to vector<16x128xbf16>
    %c0_16 = arith.constant 0 : index
    %c0_17 = arith.constant 0 : index
    %32 = vector.load %arg6[%c0_16, %c0_17] : memref<128x128xbf16, #tpu.memory_space<vmem>>, vector<128x128xbf16>
    %cst_18 = arith.constant dense<0.000000e+00> : vector<16x128xf32>
    %33 = tpu.matmul %31, %32, %cst_18 {dimension_numbers = #tpu.dot_dimension_numbers<[1], [0], [0], [1], [0, 0, 1, 1], [], []>} : vector<16x128xbf16>, vector<128x128xbf16>, vector<16x128xf32> -> vector<16x128xf32>
    %c0_19 = arith.constant 0 : index
    %c0_20 = arith.constant 0 : index
    %34 = vector.load %arg7[%c0_19, %c0_20] : memref<1x128xf32, #tpu.memory_space<vmem>>, vector<1x128xf32>
    %35 = vector.broadcast %34 : vector<1x128xf32> to vector<16x128xf32>
    %36 = arith.addf %33, %35 : vector<16x128xf32>
    %c0_21 = arith.constant 0 : index
    %c0_22 = arith.constant 0 : index
    %37 = vector.load %arg8[%c0_21, %c0_22] : memref<16x128xf32, #tpu.memory_space<vmem>>, vector<16x128xf32>
    tpu.vector_store %arg8[%c0_21, %c0_22], %36 {strides = array<i32>} : memref<16x128xf32, #tpu.memory_space<vmem>>, vector<16x128xf32>,
    return
  }
  func.func @transform_0(%arg0: i32) -> (i32, i32) {
    %c0_i32 = arith.constant 0 : i32
    %c0_i32_0 = arith.constant 0 : i32
    return %arg0, %c0_i32 : i32, i32
  }
  func.func @transform_1(%arg0: i32) -> (i32, i32) {
    %c0_i32 = arith.constant 0 : i32
    %c0_i32_0 = arith.constant 0 : i32
    %c0_i32_1 = arith.constant 0 : i32
    return %c0_i32, %c0_i32_0 : i32, i32
  }
  func.func @transform_2(%arg0: i32) -> (i32, i32) {
    %c0_i32 = arith.constant 0 : i32
    %c0_i32_0 = arith.constant 0 : i32
    %c0_i32_1 = arith.constant 0 : i32
    return %c0_i32, %c0_i32_0 : i32, i32
  }
  func.func @transform_3(%arg0: i32) -> (i32, i32) {
    %c0_i32 = arith.constant 0 : i32
    %c0_i32_0 = arith.constant 0 : i32
    %c0_i32_1 = arith.constant 0 : i32
    return %c0_i32, %c0_i32_0 : i32, i32
  }
  func.func @transform_4(%arg0: i32) -> (i32, i32) {
    %c0_i32 = arith.constant 0 : i32
    %c0_i32_0 = arith.constant 0 : i32
    %c0_i32_1 = arith.constant 0 : i32
    return %c0_i32, %c0_i32_0 : i32, i32
  }
  func.func @transform_5(%arg0: i32) -> (i32, i32) {
    %c0_i32 = arith.constant 0 : i32
    %c0_i32_0 = arith.constant 0 : i32
    %c0_i32_1 = arith.constant 0 : i32
    return %c0_i32, %c0_i32_0 : i32, i32
  }
  func.func @transform_6(%arg0: i32) -> (i32, i32) {
    %c0_i32 = arith.constant 0 : i32
    %c0_i32_0 = arith.constant 0 : i32
    %c0_i32_1 = arith.constant 0 : i32
    return %c0_i32, %c0_i32_0 : i32, i32
  }
  func.func @transform_7(%arg0: i32) -> (i32, i32) {
    %c0_i32 = arith.constant 0 : i32
    %c0_i32_0 = arith.constant 0 : i32
    return %arg0, %c0_i32 : i32, i32
  }
}

module attributes {stable_mosaic.version = 11 : i64} {
  func.func @_net_kernel(%arg0: i32, %arg1: memref<16x128xbf16, #tpu.memory_space<vmem>>, %arg2: memref<128x128xbf16, #tpu.memory_space<vmem>>, %arg3: memref<1x128xf32, #tpu.memory_space<vmem>>, %arg4: memref<128x128xbf16, #tpu.memory_space<vmem>>, %arg5: memref<1x128xf32, #tpu.memory_space<vmem>>, %arg6: memref<128x128xbf16, #tpu.memory_space<vmem>>, %arg7: memref<1x128xf32, #tpu.memory_space<vmem>>, %arg8: memref<16x128xf32, #tpu.memory_space<vmem>>) attributes {dimension_semantics = [#tpu.dimension_semantics<parallel>], iteration_bounds = array<i64: 1>, scalar_prefetch = 0 : i64, scratch_operands = 0 : i64, tpu.core_type = #tpu.core_type<tc>, window_params = [{transform_indices = @transform_0, window_bounds = array<i64: 16, 128>}, {pipeline_mode = #tpu.pipeline_mode<synchronous>, transform_indices = @transform_1, window_bounds = array<i64: 128, 128>}, {pipeline_mode = #tpu.pipeline_mode<synchronous>, transform_indices = @transform_2, window_bounds = array<i64: 1, 128>}, {pipeline_mode = #tpu.pipeline_mode<synchronous>, transform_indices = @transform_3, window_bounds = array<i64: 128, 128>}, {pipeline_mode = #tpu.pipeline_mode<synchronous>, transform_indices = @transform_4, window_bounds = array<i64: 1, 128>}, {pipeline_mode = #tpu.pipeline_mode<synchronous>, transform_indices = @transform_5, window_bounds = array<i64: 128, 128>}, {pipeline_mode = #tpu.pipeline_mode<synchronous>, transform_indices = @transform_6, window_bounds = array<i64: 1, 128>}, {transform_indices = @transform_7, window_bounds = array<i64: 16, 128>}]} {
    %c0 = arith.constant 0 : index
    %c0_0 = arith.constant 0 : index
    %0 = vector.load %arg1[%c0, %c0_0] : memref<16x128xbf16, #tpu.memory_space<vmem>>, vector<16x128xbf16>
    %1 = arith.extf %0 : vector<16x128xbf16> to vector<16x128xf32>
    %c0_1 = arith.constant 0 : index
    %c0_2 = arith.constant 0 : index
    %2 = vector.load %arg2[%c0_1, %c0_2] : memref<128x128xbf16, #tpu.memory_space<vmem>>, vector<128x128xbf16>
    %cst = arith.constant dense<0.000000e+00> : vector<16x128xf32>
    %3 = tpu.matmul %0, %2, %cst {dimension_numbers = #tpu.dot_dimension_numbers<[1], [0], [0], [1], [0, 0, 1, 1], [], []>} : vector<16x128xbf16>, vector<128x128xbf16>, vector<16x128xf32> -> vector<16x128xf32>
    %c0_3 = arith.constant 0 : index
    %c0_4 = arith.constant 0 : index
    %4 = vector.load %arg3[%c0_3, %c0_4] : memref<1x128xf32, #tpu.memory_space<vmem>>, vector<1x128xf32>
    %5 = vector.broadcast %4 : vector<1x128xf32> to vector<16x128xf32>
    %6 = arith.addf %3, %5 : vector<16x128xf32>
    %cst_5 = arith.constant 5.000000e-01 : f32
    %7 = vector.broadcast %cst_5 : f32 to vector<16x128xf32>
    %8 = arith.mulf %7, %6 : vector<16x128xf32>
    %cst_6 = arith.constant 0.707106769 : f32
    %9 = vector.broadcast %cst_6 : f32 to vector<16x128xf32>
    %10 = arith.mulf %6, %9 : vector<16x128xf32>
    %11 = math.erf %10 : vector<16x128xf32>
    %cst_7 = arith.constant 1.000000e+00 : f32
    %12 = vector.broadcast %cst_7 : f32 to vector<16x128xf32>
    %13 = arith.addf %12, %11 : vector<16x128xf32>
    %14 = arith.mulf %8, %13 : vector<16x128xf32>
    %15 = arith.addf %14, %1 : vector<16x128xf32>
    %16 = arith.truncf %15 : vector<16x128xf32> to vector<16x128xbf16>
    %c0_8 = arith.constant 0 : index
    %c0_9 = arith.constant 0 : index
    %17 = vector.load %arg4[%c0_8, %c0_9] : memref<128x128xbf16, #tpu.memory_space<vmem>>, vector<128x128xbf16>
    %cst_10 = arith.constant dense<0.000000e+00> : vector<16x128xf32>
    %18 = tpu.matmul %16, %17, %cst_10 {dimension_numbers = #tpu.dot_dimension_numbers<[1], [0], [0], [1], [0, 0, 1, 1], [], []>} : vector<16x128xbf16>, vector<128x128xbf16>, vector<16x128xf32> -> vector<16x128xf32>
    %c0_11 = arith.constant 0 : index
    %c0_12 = arith.constant 0 : index
    %19 = vector.load %arg5[%c0_11, %c0_12] : memref<1x128xf32, #tpu.memory_space<vmem>>, vector<1x128xf32>
    %20 = vector.broadcast %19 : vector<1x128xf32> to vector<16x128xf32>
    %21 = arith.addf %18, %20 : vector<16x128xf32>
    %cst_13 = arith.constant 5.000000e-01 : f32
    %22 = vector.broadcast %cst_13 : f32 to vector<16x128xf32>
    %23 = arith.mulf %22, %21 : vector<16x128xf32>
    %cst_14 = arith.constant 0.707106769 : f32
    %24 = vector.broadcast %cst_14 : f32 to vector<16x128xf32>
    %25 = arith.mulf %21, %24 : vector<16x128xf32>
    %26 = math.erf %25 : vector<16x128xf32>
    %cst_15 = arith.constant 1.000000e+00 : f32
    %27 = vector.broadcast %cst_15 : f32 to vector<16x128xf32>
    %28 = arith.addf %27, %26 : vector<16x128xf32>
    %29 = arith.mulf %23, %28 : vector<16x128xf32>
    %30 = arith.addf %29, %15 : vector<16x128xf32>
    %31 = arith.truncf %30 : vector<16x128xf32> to vector<16x128xbf16>
    %c0_16 = arith.constant 0 : index
    %c0_17 = arith.constant 0 : index
    %32 = vector.load %arg6[%c0_16, %c0_17] : memref<128x128xbf16, #tpu.memory_space<vmem>>, vector<128x128xbf16>
    %cst_18 = arith.constant dense<0.000000e+00> : vector<16x128xf32>
    %33 = tpu.matmul %31, %32, %cst_18 {dimension_numbers = #tpu.dot_dimension_numbers<[1], [0], [0], [1], [0, 0, 1, 1], [], []>} : vector<16x128xbf16>, vector<128x128xbf16>, vector<16x128xf32> -> vector<16x128xf32>
    %c0_19 = arith.constant 0 : index
    %c0_20 = arith.constant 0 : index
    %34 = vector.load %arg7[%c0_19, %c0_20] : memref<1x128xf32, #tpu.memory_space<vmem>>, vector<1x128xf32>
    %35 = vector.broadcast %34 : vector<1x128xf32> to vector<16x128xf32>
    %36 = arith.addf %33, %35 : vector<16x128xf32>
    %c0_21 = arith.constant 0 : index
    %c0_22 = arith.constant 0 : index
    %37 = vector.load %arg8[%c0_21, %c0_22] : memref<16x128xf32, #tpu.memory_space<vmem>>, vector<16x128xf32>
    tpu.vector_store %arg8[%c0_21, %c0_22], %36 {strides = array<i32>} : memref<16x128xf32, #tpu.memory_space<vmem>>, vector<16x128xf32>,
    return
  }
  func.func @transform_0(%arg0: i32) -> (i32, i32) {
    %c0_i32 = arith.constant 0 : i32
    %c0_i32_0 = arith.constant 0 : i32
    return %arg0, %c0_i32 : i32, i32
  }
  func.func @transform_1(%arg0: i32) -> (i32, i32) {
    %c0_i32 = arith.constant 0 : i32
    %c0_i32_0 = arith.constant 0 : i32
    %c0_i32_1 = arith.constant 0 : i32
    return %c0_i32, %c0_i32_0 : i32, i32
  }
  func.func @transform_2(%arg0: i32) -> (i32, i32) {
    %c0_i32 = arith.constant 0 : i32
    %c0_i32_0 = arith.constant 0 : i32
    %c0_i32_1 = arith.constant 0 : i32
    return %c0_i32, %c0_i32_0 : i32, i32
  }
  func.func @transform_3(%arg0: i32) -> (i32, i32) {
    %c0_i32 = arith.constant 0 : i32
    %c0_i32_0 = arith.constant 0 : i32
    %c0_i32_1 = arith.constant 0 : i32
    return %c0_i32, %c0_i32_0 : i32, i32
  }
  func.func @transform_4(%arg0: i32) -> (i32, i32) {
    %c0_i32 = arith.constant 0 : i32
    %c0_i32_0 = arith.constant 0 : i32
    %c0_i32_1 = arith.constant 0 : i32
    return %c0_i32, %c0_i32_0 : i32, i32
  }
  func.func @transform_5(%arg0: i32) -> (i32, i32) {
    %c0_i32 = arith.constant 0 : i32
    %c0_i32_0 = arith.constant 0 : i32
    %c0_i32_1 = arith.constant 0 : i32
    return %c0_i32, %c0_i32_0 : i32, i32
  }
  func.func @transform_6(%arg0: i32) -> (i32, i32) {
    %c0_i32 = arith.constant 0 : i32
    %c0_i32_0 = arith.constant 0 : i32
    %c0_i32_1 = arith.constant 0 : i32
    return %c0_i32, %c0_i32_0 : i32, i32
  }
  func.func @transform_7(%arg0: i32) -> (i32, i32) {
    %c0_i32 = arith.constant 0 : i32
    %c0_i32_0 = arith.constant 0 : i32
    return %arg0, %c0_i32 : i32, i32
  }
}

</mosaic_0001>

<llo_original>
// kernel: tpu_custom_call.1
$region0: #{tpu_custom_call.1}
  #allocation0 [shape = 'u32[]', space=smem, size = 0x4, offset = 0x4, fixed_abs, tag = 'smem constant byte address 0x4 - core index']
  #allocation1 [shape = 'u32[72,128]{1,0:T(1,128)}', space=vmem, size = 0x9000, scoped, tag = 'internal scratch']
  %s0 = inlined_call_operand.hbm [shape: bf16[16,128], index: 0, kind: input, shape index: {}]
  %s1 = inlined_call_operand.hbm [shape: bf16[128,128], index: 1, kind: input, shape index: {}]
  %s2 = inlined_call_operand.vmem [shape: f32[1,128], index: 2, kind: input, shape index: {}]
  %s3 = inlined_call_operand.hbm [shape: bf16[128,128], index: 3, kind: input, shape index: {}]
  %s4 = inlined_call_operand.vmem [shape: f32[1,128], index: 4, kind: input, shape index: {}]
  %s5 = inlined_call_operand.hbm [shape: bf16[128,128], index: 5, kind: input, shape index: {}]
  %s6 = inlined_call_operand.vmem [shape: f32[1,128], index: 6, kind: input, shape index: {}]
  %s7 = inlined_call_operand.hbm [shape: f32[16,128], index: 7, kind: output, shape index: {}]
  %s8 = sld [smem:[#allocation0]]
  $region54: #{tpu_custom_call.1} parent=0
    _
  %s10 = ssub.s32 1, %s8
  %s11 = scalar_select 0, %s10, %s8
  $region1: #{tpu_custom_call.1} parent=0
    #allocation2 [shape = 'u8[4096]{0}', space=vmem, size = 0x1000, scoped, tag = 'input window, operand 0, single buffered']
    #allocation3 [shape = 's32[1]{0}', space=sflag, size = 0x4, scoped, tag = 'scoped memory for tpu_custom_call.1']
    #allocation4 [shape = 's32[1]{0}', space=sflag, size = 0x4, scoped, tag = 'scoped memory for tpu_custom_call.1']
    #allocation5 [shape = 'u8[32768]{0}', space=vmem, size = 0x8000, scoped, tag = 'input window, operand 1, single buffered']
    #allocation6 [shape = 's32[1]{0}', space=sflag, size = 0x4, scoped, tag = 'scoped memory for tpu_custom_call.1']
    #allocation7 [shape = 'u8[32768]{0}', space=vmem, size = 0x8000, scoped, tag = 'input window, operand 3, single buffered']
    #allocation8 [shape = 'u8[32768]{0}', space=vmem, size = 0x8000, scoped, tag = 'input window, operand 5, single buffered']
    #allocation9 [shape = 's32[1]{0}', space=sflag, size = 0x4, scoped, tag = 'scoped memory for tpu_custom_call.1']
    #allocation10 [shape = 'u8[8192]{0}', space=vmem, size = 0x2000, scoped, tag = 'output window, operand 0, single buffered']
    %12 = vsyncpa [#allocation3], 0
    %13 = vsyncpa [#allocation6], 0
    %14 = vsyncpa [#allocation9], 0
    %15 = vsyncpa [#allocation4], 0
    // Predicated region
    $region2: #{tpu_custom_call.1} parent=1 // pred_check
      _
    $region3: #{tpu_custom_call.1} parent=1 // pred_check_branch
      %17 = sbr.rel (0) target = $region5
    $region4: #{tpu_custom_call.1} parent=1 // pred_region
      %19 = vsyncadd [#allocation3], 0
      %s20 = sshll.u32 %s0, 4
      %s21 = int_to_ptr.hbm [resolvable:$true] %s20
      %s22 = sshll.u32 [#allocation2], 4
      %s23 = int_to_ptr.vmem [resolvable:$true] %s22
      %28 = dma.hbm_to_vmem [thread:$0]  %s21, 128, %s23, [#allocation3], 64, 64, 4
    $region5: #{tpu_custom_call.1} parent=1 // pred_fallthru
      _
    // Predicated region
    $region6: #{tpu_custom_call.1} parent=1 // pred_check
      _
    $region7: #{tpu_custom_call.1} parent=1 // pred_check_branch
      %30 = sbr.rel (0) target = $region9
    $region8: #{tpu_custom_call.1} parent=1 // pred_region
      %32 = vsyncadd [#allocation6], 0
      %s33 = sshll.u32 %s1, 4
      %s34 = int_to_ptr.hbm [resolvable:$true] %s33
      %s35 = sshll.u32 [#allocation5], 4
      %s36 = int_to_ptr.vmem [resolvable:$true] %s35
      %41 = dma.hbm_to_vmem [thread:$0]  %s34, 1024, %s36, [#allocation6], 64, 64, 4
    $region9: #{tpu_custom_call.1} parent=1 // pred_fallthru
      _
    // Predicated region
    $region10: #{tpu_custom_call.1} parent=1 // pred_check
      _
    $region11: #{tpu_custom_call.1} parent=1 // pred_check_branch
      %43 = sbr.rel (0) target = $region13
    $region12: #{tpu_custom_call.1} parent=1 // pred_region
      _
    $region13: #{tpu_custom_call.1} parent=1 // pred_fallthru
      _
    // Predicated region
    $region14: #{tpu_custom_call.1} parent=1 // pred_check
      _
    $region15: #{tpu_custom_call.1} parent=1 // pred_check_branch
      %45 = sbr.rel (0) target = $region17
    $region16: #{tpu_custom_call.1} parent=1 // pred_region
      %47 = vsyncadd [#allocation6], 0
      %s48 = sshll.u32 %s3, 4
      %s49 = int_to_ptr.hbm [resolvable:$true] %s48
      %s50 = sshll.u32 [#allocation7], 4
      %s51 = int_to_ptr.vmem [resolvable:$true] %s50
      %56 = dma.hbm_to_vmem [thread:$0]  %s49, 1024, %s51, [#allocation6], 64, 64, 4
    $region17: #{tpu_custom_call.1} parent=1 // pred_fallthru
      _
    // Predicated region
    $region18: #{tpu_custom_call.1} parent=1 // pred_check
      _
    $region19: #{tpu_custom_call.1} parent=1 // pred_check_branch
      %58 = sbr.rel (0) target = $region21
    $region20: #{tpu_custom_call.1} parent=1 // pred_region
      _
    $region21: #{tpu_custom_call.1} parent=1 // pred_fallthru
      _
    // Predicated region
    $region22: #{tpu_custom_call.1} parent=1 // pred_check
      _
    $region23: #{tpu_custom_call.1} parent=1 // pred_check_branch
      %60 = sbr.rel (0) target = $region25
    $region24: #{tpu_custom_call.1} parent=1 // pred_region
      %62 = vsyncadd [#allocation9], 0
      %s63 = sshll.u32 %s5, 4
      %s64 = int_to_ptr.hbm [resolvable:$true] %s63
      %s65 = sshll.u32 [#allocation8], 4
      %s66 = int_to_ptr.vmem [resolvable:$true] %s65
      %71 = dma.hbm_to_vmem [thread:$0]  %s64, 1024, %s66, [#allocation9], 64, 64, 4
    $region25: #{tpu_custom_call.1} parent=1 // pred_fallthru
      _
    // Predicated region
    $region26: #{tpu_custom_call.1} parent=1 // pred_check
      _
    $region27: #{tpu_custom_call.1} parent=1 // pred_check_branch
      %73 = sbr.rel (0) target = $region29
    $region28: #{tpu_custom_call.1} parent=1 // pred_region
      _
    $region29: #{tpu_custom_call.1} parent=1 // pred_fallthru
      _
    // Predicated region
    $region30: #{tpu_custom_call.1} parent=1 // pred_check
      _
    $region31: #{tpu_custom_call.1} parent=1 // pred_check_branch
      %75 = sbr.rel (0) target = $region33
    $region32: #{tpu_custom_call.1} parent=1 // pred_region
      %77 = dma.done [#allocation3], 128
    $region33: #{tpu_custom_call.1} parent=1 // pred_fallthru
      _
    // Predicated region
    $region34: #{tpu_custom_call.1} parent=1 // pred_check
      _
    $region35: #{tpu_custom_call.1} parent=1 // pred_check_branch
      %79 = sbr.rel (0) target = $region37
    $region36: #{tpu_custom_call.1} parent=1 // pred_region
      %81 = dma.done [#allocation6], 1024
    $region37: #{tpu_custom_call.1} parent=1 // pred_fallthru
      _
    // Predicated region
    $region38: #{tpu_custom_call.1} parent=1 // pred_check
      _
    $region39: #{tpu_custom_call.1} parent=1 // pred_check_branch
      %83 = sbr.rel (0) target = $region41
    $region40: #{tpu_custom_call.1} parent=1 // pred_region
      %85 = dma.done [#allocation6], 1024
    $region41: #{tpu_custom_call.1} parent=1 // pred_fallthru
      _
    // Predicated region
    $region42: #{tpu_custom_call.1} parent=1 // pred_check
      _
    $region43: #{tpu_custom_call.1} parent=1 // pred_check_branch
      %87 = sbr.rel (0) target = $region45
    $region44: #{tpu_custom_call.1} parent=1 // pred_region
      %89 = dma.done [#allocation9], 1024
    $region45: #{tpu_custom_call.1} parent=1 // pred_fallthru
      _
    %v90 = vld [vmem:[#allocation2] sm:$0xf]
    %v91 = vld [vmem:[#allocation2 + $0x4] sm:$0xf]
    %v92 = vunpack.c.l.bf16 %v90
    %v93 = vunpack.c.l.bf16 %v91
    %v94 = vld [vmem:[#allocation5] sm:$0xf]
    %v95 = vld [vmem:[#allocation5 + $0x4] sm:$0xf]
    %v96 = vld [vmem:[#allocation5 + $0x8] sm:$0xf]
    %v97 = vld [vmem:[#allocation5 + $0xc] sm:$0xf]
    %v98 = vld [vmem:[#allocation5 + $0x10] sm:$0xf]
    %v99 = vld [vmem:[#allocation5 + $0x14] sm:$0xf]
    %v100 = vld [vmem:[#allocation5 + $0x18] sm:$0xf]
    %v101 = vld [vmem:[#allocation5 + $0x1c] sm:$0xf]
    %v102 = vld [vmem:[#allocation5 + $0x20] sm:$0xf]
    %v103 = vld [vmem:[#allocation5 + $0x24] sm:$0xf]
    %v104 = vld [vmem:[#allocation5 + $0x28] sm:$0xf]
    %v105 = vld [vmem:[#allocation5 + $0x2c] sm:$0xf]
    %v106 = vld [vmem:[#allocation5 + $0x30] sm:$0xf]
    %v107 = vld [vmem:[#allocation5 + $0x34] sm:$0xf]
    %v108 = vld [vmem:[#allocation5 + $0x38] sm:$0xf]
    %v109 = vld [vmem:[#allocation5 + $0x3c] sm:$0xf]
    %v110 = vld [vmem:[%s2] sm:$0x1]
    %v112 = vperm.slane %v110, 0
    %v116 = vunpack.c.l.b16 %v90
    %v117 = vunpack.c.l.b16 %v91
    %v118 = vpack.c.b16 %v117, %v116
    %v136 = vunpack.c.l.b16 %v94
    %v137 = vunpack.c.l.b16 %v95
    %v138 = vunpack.c.l.b16 %v96
    %v139 = vunpack.c.l.b16 %v97
    %v140 = vunpack.c.l.b16 %v98
    %v141 = vunpack.c.l.b16 %v99
    %v142 = vunpack.c.l.b16 %v100
    %v143 = vunpack.c.l.b16 %v101
    %v144 = vunpack.c.l.b16 %v102
    %v145 = vunpack.c.l.b16 %v103
    %v146 = vunpack.c.l.b16 %v104
    %v147 = vunpack.c.l.b16 %v105
    %v148 = vunpack.c.l.b16 %v106
    %v149 = vunpack.c.l.b16 %v107
    %v150 = vunpack.c.l.b16 %v108
    %v151 = vunpack.c.l.b16 %v109
    %v152 = vpack.c.b16 %v137, %v136
    %v153 = vpack.c.b16 %v139, %v138
    %v154 = vpack.c.b16 %v141, %v140
    %v155 = vpack.c.b16 %v143, %v142
    %v156 = vpack.c.b16 %v145, %v144
    %v157 = vpack.c.b16 %v147, %v146
    %v158 = vpack.c.b16 %v149, %v148
    %v159 = vpack.c.b16 %v151, %v150
    %168 = vmatpush.bf16.msra.mxu0 %v159
    %169 = vmatpush.bf16.msra.mxu0 %v158
    %170 = vmatpush.bf16.msra.mxu0 %v157
    %171 = vmatpush.bf16.msra.mxu0 %v156
    %172 = vmatpush.bf16.msra.mxu0 %v155
    %173 = vmatpush.bf16.msra.mxu0 %v154
    %174 = vmatpush.bf16.msra.mxu0 %v153
    %175 = vmatpush.bf16.msra.mxu0 %v152
    %176 = vmatmul.bf16.gmra.mxu0 %v118
    %v177 = vpop.f32.mrf.mxu0
    %v178 = vadd.f32 %v112, %v177
    %v179 = vpop.f32.mrf.mxu0
    %v180 = vadd.f32 %v112, %v179
    %181 = vdwg.mxu0
    %v182 = vmul.f32 %v178, 0.5
    %v183 = vmul.f32 %v180, 0.5
    %v184 = vmul.f32 %v178, 0.70710677
    %v185 = vmul.f32 %v180, 0.70710677
    %v186 = vmul.f32 %v184, %v184
    %v187 = vmin.f32 16.0, %v186
    %v188 = vmul.f32 %v187, 2.1237322e-06
    %v189 = vadd.f32 %v188, 0.00028619796
    %v190 = vmul.f32 %v187, %v189
    %v191 = vadd.f32 %v190, 0.0036580483
    %v192 = vmul.f32 %v187, %v191
    %v193 = vadd.f32 %v192, 0.05243302
    %v194 = vmul.f32 %v187, %v193
    %v195 = vadd.f32 %v194, 0.18741608
    %v196 = vmul.f32 %v187, %v195
    %v197 = vadd.f32 %v196, 1.1283791
    %v198 = vmul.f32 %v184, %v197
    %v199 = vmul.f32 %v187, 3.8918573e-05
    %v200 = vadd.f32 %v199, 0.001143296
    %v201 = vmul.f32 %v187, %v200
    %v202 = vadd.f32 %v201, 0.014752088
    %v203 = vmul.f32 %v187, %v202
    %v204 = vadd.f32 %v203, 0.112945676
    %v205 = vmul.f32 %v187, %v204
    %v206 = vadd.f32 %v205, 0.4994258
    %v207 = vmul.f32 %v187, %v206
    %v208 = vadd.f32 %v207, 1.0
    %v209 = vrcp.pop %v208
    %v210 = vmul.f32 %v208, %v209
    %v211 = vsub.f32 1.0, %v210
    %v212 = vmul.f32 %v209, %v211
    %v213 = vadd.f32 %v209, %v212
    %vm214 = vweird.f32 %v208
    %vm215 = vweird.f32 %v209
    %vm216 = vmor %vm214, %vm215
    %v217 = vsel %vm216, %v209, %v213
    %v218 = vand.u32 2147483647, %v208
    %vm219 = vcmp.eq.f32.partialorder %v218, 8.507059e+37
    %v220 = vand.u32 %v208, 2147483648
    %v221 = vor.u32 1.1754944e-38, %v220
    %v222 = vsel %vm219, %v221, %v217
    %v223 = vmul.f32 %v198, %v222
    %v224 = vmin.f32 %v223, 1.0
    %v225 = vmax.f32 %v224, -1.0
    %v226 = vmul.f32 %v185, %v185
    %v227 = vmin.f32 16.0, %v226
    %v228 = vmul.f32 %v227, 2.1237322e-06
    %v229 = vadd.f32 %v228, 0.00028619796
    %v230 = vmul.f32 %v227, %v229
    %v231 = vadd.f32 %v230, 0.0036580483
    %v232 = vmul.f32 %v227, %v231
    %v233 = vadd.f32 %v232, 0.05243302
    %v234 = vmul.f32 %v227, %v233
    %v235 = vadd.f32 %v234, 0.18741608
    %v236 = vmul.f32 %v227, %v235
    %v237 = vadd.f32 %v236, 1.1283791
    %v238 = vmul.f32 %v185, %v237
    %v239 = vmul.f32 %v227, 3.8918573e-05
    %v240 = vadd.f32 %v239, 0.001143296
    %v241 = vmul.f32 %v227, %v240
    %v242 = vadd.f32 %v241, 0.014752088
    %v243 = vmul.f32 %v227, %v242
    %v244 = vadd.f32 %v243, 0.112945676
    %v245 = vmul.f32 %v227, %v244
    %v246 = vadd.f32 %v245, 0.4994258
    %v247 = vmul.f32 %v227, %v246
    %v248 = vadd.f32 %v247, 1.0
    %v249 = vrcp.pop %v248
    %v250 = vmul.f32 %v248, %v249
    %v251 = vsub.f32 1.0, %v250
    %v252 = vmul.f32 %v249, %v251
    %v253 = vadd.f32 %v249, %v252
    %vm254 = vweird.f32 %v248
    %vm255 = vweird.f32 %v249
    %vm256 = vmor %vm254, %vm255
    %v257 = vsel %vm256, %v249, %v253
    %v258 = vand.u32 2147483647, %v248
    %vm259 = vcmp.eq.f32.partialorder %v258, 8.507059e+37
    %v260 = vand.u32 %v248, 2147483648
    %v261 = vor.u32 1.1754944e-38, %v260
    %v262 = vsel %vm259, %v261, %v257
    %v263 = vmul.f32 %v238, %v262
    %v264 = vmin.f32 %v263, 1.0
    %v265 = vmax.f32 %v264, -1.0
    %v266 = vadd.f32 %v225, 1.0
    %v267 = vadd.f32 %v265, 1.0
    %v268 = vmul.f32 %v182, %v266
    %v269 = vmul.f32 %v183, %v267
    %v270 = vadd.f32 %v268, %v92
    %v271 = vadd.f32 %v269, %v93
    %v272 = vpack.c.bf16 %v271, %v270
    %v273 = vld [vmem:[#allocation7] sm:$0xf]
    %v274 = vld [vmem:[#allocation7 + $0x4] sm:$0xf]
    %v275 = vld [vmem:[#allocation7 + $0x8] sm:$0xf]
    %v276 = vld [vmem:[#allocation7 + $0xc] sm:$0xf]
    %v277 = vld [vmem:[#allocation7 + $0x10] sm:$0xf]
    %v278 = vld [vmem:[#allocation7 + $0x14] sm:$0xf]
    %v279 = vld [vmem:[#allocation7 + $0x18] sm:$0xf]
    %v280 = vld [vmem:[#allocation7 + $0x1c] sm:$0xf]
    %v281 = vld [vmem:[#allocation7 + $0x20] sm:$0xf]
    %v282 = vld [vmem:[#allocation7 + $0x24] sm:$0xf]
    %v283 = vld [vmem:[#allocation7 + $0x28] sm:$0xf]
    %v284 = vld [vmem:[#allocation7 + $0x2c] sm:$0xf]
    %v285 = vld [vmem:[#allocation7 + $0x30] sm:$0xf]
    %v286 = vld [vmem:[#allocation7 + $0x34] sm:$0xf]
    %v287 = vld [vmem:[#allocation7 + $0x38] sm:$0xf]
    %v288 = vld [vmem:[#allocation7 + $0x3c] sm:$0xf]
    %v289 = vld [vmem:[%s4] sm:$0x1]
    %v291 = vperm.slane %v289, 0
    %v309 = vunpack.c.l.b16 %v273
    %v310 = vunpack.c.l.b16 %v274
    %v311 = vunpack.c.l.b16 %v275
    %v312 = vunpack.c.l.b16 %v276
    %v313 = vunpack.c.l.b16 %v277
    %v314 = vunpack.c.l.b16 %v278
    %v315 = vunpack.c.l.b16 %v279
    %v316 = vunpack.c.l.b16 %v280
    %v317 = vunpack.c.l.b16 %v281
    %v318 = vunpack.c.l.b16 %v282
    %v319 = vunpack.c.l.b16 %v283
    %v320 = vunpack.c.l.b16 %v284
    %v321 = vunpack.c.l.b16 %v285
    %v322 = vunpack.c.l.b16 %v286
    %v323 = vunpack.c.l.b16 %v287
    %v324 = vunpack.c.l.b16 %v288
    %v325 = vpack.c.b16 %v310, %v309
    %v326 = vpack.c.b16 %v312, %v311
    %v327 = vpack.c.b16 %v314, %v313
    %v328 = vpack.c.b16 %v316, %v315
    %v329 = vpack.c.b16 %v318, %v317
    %v330 = vpack.c.b16 %v320, %v319
    %v331 = vpack.c.b16 %v322, %v321
    %v332 = vpack.c.b16 %v324, %v323
    %341 = vmatpush.bf16.msra.mxu0 %v332
    %342 = vmatpush.bf16.msra.mxu0 %v331
    %343 = vmatpush.bf16.msra.mxu0 %v330
    %344 = vmatpush.bf16.msra.mxu0 %v329
    %345 = vmatpush.bf16.msra.mxu0 %v328
    %346 = vmatpush.bf16.msra.mxu0 %v327
    %347 = vmatpush.bf16.msra.mxu0 %v326
    %348 = vmatpush.bf16.msra.mxu0 %v325
    %349 = vmatmul.bf16.gmra.mxu0 %v272
    %v350 = vpop.f32.mrf.mxu0
    %v351 = vadd.f32 %v291, %v350
    %v352 = vpop.f32.mrf.mxu0
    %v353 = vadd.f32 %v291, %v352
    %354 = vdwg.mxu0
    %v355 = vmul.f32 %v351, 0.5
    %v356 = vmul.f32 %v353, 0.5
    %v357 = vmul.f32 %v351, 0.70710677
    %v358 = vmul.f32 %v353, 0.70710677
    %v359 = vmul.f32 %v357, %v357
    %v360 = vmin.f32 16.0, %v359
    %v361 = vmul.f32 %v360, 2.1237322e-06
    %v362 = vadd.f32 %v361, 0.00028619796
    %v363 = vmul.f32 %v360, %v362
    %v364 = vadd.f32 %v363, 0.0036580483
    %v365 = vmul.f32 %v360, %v364
    %v366 = vadd.f32 %v365, 0.05243302
    %v367 = vmul.f32 %v360, %v366
    %v368 = vadd.f32 %v367, 0.18741608
    %v369 = vmul.f32 %v360, %v368
    %v370 = vadd.f32 %v369, 1.1283791
    %v371 = vmul.f32 %v357, %v370
    %v372 = vmul.f32 %v360, 3.8918573e-05
    %v373 = vadd.f32 %v372, 0.001143296
    %v374 = vmul.f32 %v360, %v373
    %v375 = vadd.f32 %v374, 0.014752088
    %v376 = vmul.f32 %v360, %v375
    %v377 = vadd.f32 %v376, 0.112945676
    %v378 = vmul.f32 %v360, %v377
    %v379 = vadd.f32 %v378, 0.4994258
    %v380 = vmul.f32 %v360, %v379
    %v381 = vadd.f32 %v380, 1.0
    %v382 = vrcp.pop %v381
    %v383 = vmul.f32 %v381, %v382
    %v384 = vsub.f32 1.0, %v383
    %v385 = vmul.f32 %v382, %v384
    %v386 = vadd.f32 %v382, %v385
    %vm387 = vweird.f32 %v381
    %vm388 = vweird.f32 %v382
    %vm389 = vmor %vm387, %vm388
    %v390 = vsel %vm389, %v382, %v386
    %v391 = vand.u32 2147483647, %v381
    %vm392 = vcmp.eq.f32.partialorder %v391, 8.507059e+37
    %v393 = vand.u32 %v381, 2147483648
    %v394 = vor.u32 1.1754944e-38, %v393
    %v395 = vsel %vm392, %v394, %v390
    %v396 = vmul.f32 %v371, %v395
    %v397 = vmin.f32 %v396, 1.0
    %v398 = vmax.f32 %v397, -1.0
    %v399 = vmul.f32 %v358, %v358
    %v400 = vmin.f32 16.0, %v399
    %v401 = vmul.f32 %v400, 2.1237322e-06
    %v402 = vadd.f32 %v401, 0.00028619796
    %v403 = vmul.f32 %v400, %v402
    %v404 = vadd.f32 %v403, 0.0036580483
    %v405 = vmul.f32 %v400, %v404
    %v406 = vadd.f32 %v405, 0.05243302
    %v407 = vmul.f32 %v400, %v406
    %v408 = vadd.f32 %v407, 0.18741608
    %v409 = vmul.f32 %v400, %v408
    %v410 = vadd.f32 %v409, 1.1283791
    %v411 = vmul.f32 %v358, %v410
    %v412 = vmul.f32 %v400, 3.8918573e-05
    %v413 = vadd.f32 %v412, 0.001143296
    %v414 = vmul.f32 %v400, %v413
    %v415 = vadd.f32 %v414, 0.014752088
    %v416 = vmul.f32 %v400, %v415
    %v417 = vadd.f32 %v416, 0.112945676
    %v418 = vmul.f32 %v400, %v417
    %v419 = vadd.f32 %v418, 0.4994258
    %v420 = vmul.f32 %v400, %v419
    %v421 = vadd.f32 %v420, 1.0
    %v422 = vrcp.pop %v421
    %v423 = vmul.f32 %v421, %v422
    %v424 = vsub.f32 1.0, %v423
    %v425 = vmul.f32 %v422, %v424
    %v426 = vadd.f32 %v422, %v425
    %vm427 = vweird.f32 %v421
    %vm428 = vweird.f32 %v422
    %vm429 = vmor %vm427, %vm428
    %v430 = vsel %vm429, %v422, %v426
    %v431 = vand.u32 2147483647, %v421
    %vm432 = vcmp.eq.f32.partialorder %v431, 8.507059e+37
    %v433 = vand.u32 %v421, 2147483648
    %v434 = vor.u32 1.1754944e-38, %v433
    %v435 = vsel %vm432, %v434, %v430
    %v436 = vmul.f32 %v411, %v435
    %v437 = vmin.f32 %v436, 1.0
    %v438 = vmax.f32 %v437, -1.0
    %v439 = vadd.f32 %v398, 1.0
    %v440 = vadd.f32 %v438, 1.0
    %v441 = vmul.f32 %v355, %v439
    %v442 = vmul.f32 %v356, %v440
    %v443 = vadd.f32 %v441, %v270
    %v444 = vadd.f32 %v442, %v271
    %v445 = vpack.c.bf16 %v444, %v443
    %v446 = vld [vmem:[#allocation8] sm:$0xf]
    %v447 = vld [vmem:[#allocation8 + $0x4] sm:$0xf]
    %v448 = vld [vmem:[#allocation8 + $0x8] sm:$0xf]
    %v449 = vld [vmem:[#allocation8 + $0xc] sm:$0xf]
    %v450 = vld [vmem:[#allocation8 + $0x10] sm:$0xf]
    %v451 = vld [vmem:[#allocation8 + $0x14] sm:$0xf]
    %v452 = vld [vmem:[#allocation8 + $0x18] sm:$0xf]
    %v453 = vld [vmem:[#allocation8 + $0x1c] sm:$0xf]
    %v454 = vld [vmem:[#allocation8 + $0x20] sm:$0xf]
    %v455 = vld [vmem:[#allocation8 + $0x24] sm:$0xf]
    %v456 = vld [vmem:[#allocation8 + $0x28] sm:$0xf]
    %v457 = vld [vmem:[#allocation8 + $0x2c] sm:$0xf]
    %v458 = vld [vmem:[#allocation8 + $0x30] sm:$0xf]
    %v459 = vld [vmem:[#allocation8 + $0x34] sm:$0xf]
    %v460 = vld [vmem:[#allocation8 + $0x38] sm:$0xf]
    %v461 = vld [vmem:[#allocation8 + $0x3c] sm:$0xf]
    %v462 = vld [vmem:[%s6] sm:$0x1]
    %v464 = vperm.slane %v462, 0
    %v482 = vunpack.c.l.b16 %v446
    %v483 = vunpack.c.l.b16 %v447
    %v484 = vunpack.c.l.b16 %v448
    %v485 = vunpack.c.l.b16 %v449
    %v486 = vunpack.c.l.b16 %v450
    %v487 = vunpack.c.l.b16 %v451
    %v488 = vunpack.c.l.b16 %v452
    %v489 = vunpack.c.l.b16 %v453
    %v490 = vunpack.c.l.b16 %v454
    %v491 = vunpack.c.l.b16 %v455
    %v492 = vunpack.c.l.b16 %v456
    %v493 = vunpack.c.l.b16 %v457
    %v494 = vunpack.c.l.b16 %v458
    %v495 = vunpack.c.l.b16 %v459
    %v496 = vunpack.c.l.b16 %v460
    %v497 = vunpack.c.l.b16 %v461
    %v498 = vpack.c.b16 %v483, %v482
    %v499 = vpack.c.b16 %v485, %v484
    %v500 = vpack.c.b16 %v487, %v486
    %v501 = vpack.c.b16 %v489, %v488
    %v502 = vpack.c.b16 %v491, %v490
    %v503 = vpack.c.b16 %v493, %v492
    %v504 = vpack.c.b16 %v495, %v494
    %v505 = vpack.c.b16 %v497, %v496
    %514 = vmatpush.bf16.msra.mxu0 %v505
    %515 = vmatpush.bf16.msra.mxu0 %v504
    %516 = vmatpush.bf16.msra.mxu0 %v503
    %517 = vmatpush.bf16.msra.mxu0 %v502
    %518 = vmatpush.bf16.msra.mxu0 %v501
    %519 = vmatpush.bf16.msra.mxu0 %v500
    %520 = vmatpush.bf16.msra.mxu0 %v499
    %521 = vmatpush.bf16.msra.mxu0 %v498
    %522 = vmatmul.bf16.gmra.mxu0 %v445
    %v523 = vpop.f32.mrf.mxu0
    %v524 = vadd.f32 %v464, %v523
    %v525 = vpop.f32.mrf.mxu0
    %v526 = vadd.f32 %v464, %v525
    %527 = vdwg.mxu0
    %528 = vst [vmem:[#allocation10] sm:$0xff] %v524
    %529 = vst [vmem:[#allocation10 + $0x8] sm:$0xff] %v526
    // Predicated region
    $region46: #{tpu_custom_call.1} parent=1 // pred_check
      _
    $region47: #{tpu_custom_call.1} parent=1 // pred_check_branch
      %531 = sbr.rel (0) target = $region49
    $region48: #{tpu_custom_call.1} parent=1 // pred_region
      %533 = vsyncadd [#allocation4], 0
      %s534 = sshll.u32 [#allocation10], 4
      %s535 = int_to_ptr.vmem [resolvable:$true] %s534
      %s536 = sshll.u32 %s7, 4
      %s537 = int_to_ptr.hbm [resolvable:$true] %s536
      %542 = dma.vmem_to_hbm [thread:$0]  %s535, 256, %s537, [#allocation4], 128, 128, 8
    $region49: #{tpu_custom_call.1} parent=1 // pred_fallthru
      _
    // Predicated region
    $region50: #{tpu_custom_call.1} parent=1 // pred_check
      _
    $region51: #{tpu_custom_call.1} parent=1 // pred_check_branch
      %544 = sbr.rel (0) target = $region53
    $region52: #{tpu_custom_call.1} parent=1 // pred_region
      %546 = dma.done [#allocation4], 256
    $region53: #{tpu_custom_call.1} parent=1 // pred_fallthru
      _
    %547 = vsyncpa [#allocation3], 1
    %548 = vsyncpa [#allocation6], 1
    %549 = vsyncpa [#allocation9], 1
    %550 = vsyncpa [#allocation4], 1

// kernel: tpu_custom_call.1
$region0: #{tpu_custom_call.1}
  #allocation0 [shape = 'u32[]', space=smem, size = 0x4, offset = 0x4, fixed_abs, tag = 'smem constant byte address 0x4 - core index']
  #allocation1 [shape = 'u32[72,128]{1,0:T(1,128)}', space=vmem, size = 0x9000, scoped, tag = 'internal scratch']
  %s0 = inlined_call_operand.hbm [shape: bf16[16,128], index: 0, kind: input, shape index: {}]
  %s1 = inlined_call_operand.hbm [shape: bf16[128,128], index: 1, kind: input, shape index: {}]
  %s2 = inlined_call_operand.vmem [shape: f32[1,128], index: 2, kind: input, shape index: {}]
  %s3 = inlined_call_operand.hbm [shape: bf16[128,128], index: 3, kind: input, shape index: {}]
  %s4 = inlined_call_operand.vmem [shape: f32[1,128], index: 4, kind: input, shape index: {}]
  %s5 = inlined_call_operand.hbm [shape: bf16[128,128], index: 5, kind: input, shape index: {}]
  %s6 = inlined_call_operand.vmem [shape: f32[1,128], index: 6, kind: input, shape index: {}]
  %s7 = inlined_call_operand.hbm [shape: f32[16,128], index: 7, kind: output, shape index: {}]
  %s8 = sld [smem:[#allocation0]]
  $region54: #{tpu_custom_call.1} parent=0
    _
  %s10 = ssub.s32 1, %s8
  %s11 = scalar_select 0, %s10, %s8
  $region1: #{tpu_custom_call.1} parent=0
    #allocation2 [shape = 'u8[4096]{0}', space=vmem, size = 0x1000, scoped, tag = 'input window, operand 0, single buffered']
    #allocation3 [shape = 's32[1]{0}', space=sflag, size = 0x4, scoped, tag = 'scoped memory for tpu_custom_call.1']
    #allocation4 [shape = 's32[1]{0}', space=sflag, size = 0x4, scoped, tag = 'scoped memory for tpu_custom_call.1']
    #allocation5 [shape = 'u8[32768]{0}', space=vmem, size = 0x8000, scoped, tag = 'input window, operand 1, single buffered']
    #allocation6 [shape = 's32[1]{0}', space=sflag, size = 0x4, scoped, tag = 'scoped memory for tpu_custom_call.1']
    #allocation7 [shape = 'u8[32768]{0}', space=vmem, size = 0x8000, scoped, tag = 'input window, operand 3, single buffered']
    #allocation8 [shape = 'u8[32768]{0}', space=vmem, size = 0x8000, scoped, tag = 'input window, operand 5, single buffered']
    #allocation9 [shape = 's32[1]{0}', space=sflag, size = 0x4, scoped, tag = 'scoped memory for tpu_custom_call.1']
    #allocation10 [shape = 'u8[8192]{0}', space=vmem, size = 0x2000, scoped, tag = 'output window, operand 0, single buffered']
    %12 = vsyncpa [#allocation3], 0
    %13 = vsyncpa [#allocation6], 0
    %14 = vsyncpa [#allocation9], 0
    %15 = vsyncpa [#allocation4], 0
    // Predicated region
    $region2: #{tpu_custom_call.1} parent=1 // pred_check
      _
    $region3: #{tpu_custom_call.1} parent=1 // pred_check_branch
      %17 = sbr.rel (0) target = $region5
    $region4: #{tpu_custom_call.1} parent=1 // pred_region
      %19 = vsyncadd [#allocation3], 0
      %s20 = sshll.u32 %s0, 4
      %s21 = int_to_ptr.hbm [resolvable:$true] %s20
      %s22 = sshll.u32 [#allocation2], 4
      %s23 = int_to_ptr.vmem [resolvable:$true] %s22
      %28 = dma.hbm_to_vmem [thread:$0]  %s21, 128, %s23, [#allocation3], 64, 64, 4
    $region5: #{tpu_custom_call.1} parent=1 // pred_fallthru
      _
    // Predicated region
    $region6: #{tpu_custom_call.1} parent=1 // pred_check
      _
    $region7: #{tpu_custom_call.1} parent=1 // pred_check_branch
      %30 = sbr.rel (0) target = $region9
    $region8: #{tpu_custom_call.1} parent=1 // pred_region
      %32 = vsyncadd [#allocation6], 0
      %s33 = sshll.u32 %s1, 4
      %s34 = int_to_ptr.hbm [resolvable:$true] %s33
      %s35 = sshll.u32 [#allocation5], 4
      %s36 = int_to_ptr.vmem [resolvable:$true] %s35
      %41 = dma.hbm_to_vmem [thread:$0]  %s34, 1024, %s36, [#allocation6], 64, 64, 4
    $region9: #{tpu_custom_call.1} parent=1 // pred_fallthru
      _
    // Predicated region
    $region10: #{tpu_custom_call.1} parent=1 // pred_check
      _
    $region11: #{tpu_custom_call.1} parent=1 // pred_check_branch
      %43 = sbr.rel (0) target = $region13
    $region12: #{tpu_custom_call.1} parent=1 // pred_region
      _
    $region13: #{tpu_custom_call.1} parent=1 // pred_fallthru
      _
    // Predicated region
    $region14: #{tpu_custom_call.1} parent=1 // pred_check
      _
    $region15: #{tpu_custom_call.1} parent=1 // pred_check_branch
      %45 = sbr.rel (0) target = $region17
    $region16: #{tpu_custom_call.1} parent=1 // pred_region
      %47 = vsyncadd [#allocation6], 0
      %s48 = sshll.u32 %s3, 4
      %s49 = int_to_ptr.hbm [resolvable:$true] %s48
      %s50 = sshll.u32 [#allocation7], 4
      %s51 = int_to_ptr.vmem [resolvable:$true] %s50
      %56 = dma.hbm_to_vmem [thread:$0]  %s49, 1024, %s51, [#allocation6], 64, 64, 4
    $region17: #{tpu_custom_call.1} parent=1 // pred_fallthru
      _
    // Predicated region
    $region18: #{tpu_custom_call.1} parent=1 // pred_check
      _
    $region19: #{tpu_custom_call.1} parent=1 // pred_check_branch
      %58 = sbr.rel (0) target = $region21
    $region20: #{tpu_custom_call.1} parent=1 // pred_region
      _
    $region21: #{tpu_custom_call.1} parent=1 // pred_fallthru
      _
    // Predicated region
    $region22: #{tpu_custom_call.1} parent=1 // pred_check
      _
    $region23: #{tpu_custom_call.1} parent=1 // pred_check_branch
      %60 = sbr.rel (0) target = $region25
    $region24: #{tpu_custom_call.1} parent=1 // pred_region
      %62 = vsyncadd [#allocation9], 0
      %s63 = sshll.u32 %s5, 4
      %s64 = int_to_ptr.hbm [resolvable:$true] %s63
      %s65 = sshll.u32 [#allocation8], 4
      %s66 = int_to_ptr.vmem [resolvable:$true] %s65
      %71 = dma.hbm_to_vmem [thread:$0]  %s64, 1024, %s66, [#allocation9], 64, 64, 4
    $region25: #{tpu_custom_call.1} parent=1 // pred_fallthru
      _
    // Predicated region
    $region26: #{tpu_custom_call.1} parent=1 // pred_check
      _
    $region27: #{tpu_custom_call.1} parent=1 // pred_check_branch
      %73 = sbr.rel (0) target = $region29
    $region28: #{tpu_custom_call.1} parent=1 // pred_region
      _
    $region29: #{tpu_custom_call.1} parent=1 // pred_fallthru
      _
    // Predicated region
    $region30: #{tpu_custom_call.1} parent=1 // pred_check
      _
    $region31: #{tpu_custom_call.1} parent=1 // pred_check_branch
      %75 = sbr.rel (0) target = $region33
    $region32: #{tpu_custom_call.1} parent=1 // pred_region
      %77 = dma.done [#allocation3], 128
    $region33: #{tpu_custom_call.1} parent=1 // pred_fallthru
      _
    // Predicated region
    $region34: #{tpu_custom_call.1} parent=1 // pred_check
      _
    $region35: #{tpu_custom_call.1} parent=1 // pred_check_branch
      %79 = sbr.rel (0) target = $region37
    $region36: #{tpu_custom_call.1} parent=1 // pred_region
      %81 = dma.done [#allocation6], 1024
    $region37: #{tpu_custom_call.1} parent=1 // pred_fallthru
      _
    // Predicated region
    $region38: #{tpu_custom_call.1} parent=1 // pred_check
      _
    $region39: #{tpu_custom_call.1} parent=1 // pred_check_branch
      %83 = sbr.rel (0) target = $region41
    $region40: #{tpu_custom_call.1} parent=1 // pred_region
      %85 = dma.done [#allocation6], 1024
    $region41: #{tpu_custom_call.1} parent=1 // pred_fallthru
      _
    // Predicated region
    $region42: #{tpu_custom_call.1} parent=1 // pred_check
      _
    $region43: #{tpu_custom_call.1} parent=1 // pred_check_branch
      %87 = sbr.rel (0) target = $region45
    $region44: #{tpu_custom_call.1} parent=1 // pred_region
      %89 = dma.done [#allocation9], 1024
    $region45: #{tpu_custom_call.1} parent=1 // pred_fallthru
      _
    %v90 = vld [vmem:[#allocation2] sm:$0xf]
    %v91 = vld [vmem:[#allocation2 + $0x4] sm:$0xf]
    %v92 = vunpack.c.l.bf16 %v90
    %v93 = vunpack.c.l.bf16 %v91
    %v94 = vld [vmem:[#allocation5] sm:$0xf]
    %v95 = vld [vmem:[#allocation5 + $0x4] sm:$0xf]
    %v96 = vld [vmem:[#allocation5 + $0x8] sm:$0xf]
    %v97 = vld [vmem:[#allocation5 + $0xc] sm:$0xf]
    %v98 = vld [vmem:[#allocation5 + $0x10] sm:$0xf]
    %v99 = vld [vmem:[#allocation5 + $0x14] sm:$0xf]
    %v100 = vld [vmem:[#allocation5 + $0x18] sm:$0xf]
    %v101 = vld [vmem:[#allocation5 + $0x1c] sm:$0xf]
    %v102 = vld [vmem:[#allocation5 + $0x20] sm:$0xf]
    %v103 = vld [vmem:[#allocation5 + $0x24] sm:$0xf]
    %v104 = vld [vmem:[#allocation5 + $0x28] sm:$0xf]
    %v105 = vld [vmem:[#allocation5 + $0x2c] sm:$0xf]
    %v106 = vld [vmem:[#allocation5 + $0x30] sm:$0xf]
    %v107 = vld [vmem:[#allocation5 + $0x34] sm:$0xf]
    %v108 = vld [vmem:[#allocation5 + $0x38] sm:$0xf]
    %v109 = vld [vmem:[#allocation5 + $0x3c] sm:$0xf]
    %v110 = vld [vmem:[%s2] sm:$0x1]
    %v112 = vperm.slane %v110, 0
    %v116 = vunpack.c.l.b16 %v90
    %v117 = vunpack.c.l.b16 %v91
    %v118 = vpack.c.b16 %v117, %v116
    %v136 = vunpack.c.l.b16 %v94
    %v137 = vunpack.c.l.b16 %v95
    %v138 = vunpack.c.l.b16 %v96
    %v139 = vunpack.c.l.b16 %v97
    %v140 = vunpack.c.l.b16 %v98
    %v141 = vunpack.c.l.b16 %v99
    %v142 = vunpack.c.l.b16 %v100
    %v143 = vunpack.c.l.b16 %v101
    %v144 = vunpack.c.l.b16 %v102
    %v145 = vunpack.c.l.b16 %v103
    %v146 = vunpack.c.l.b16 %v104
    %v147 = vunpack.c.l.b16 %v105
    %v148 = vunpack.c.l.b16 %v106
    %v149 = vunpack.c.l.b16 %v107
    %v150 = vunpack.c.l.b16 %v108
    %v151 = vunpack.c.l.b16 %v109
    %v152 = vpack.c.b16 %v137, %v136
    %v153 = vpack.c.b16 %v139, %v138
    %v154 = vpack.c.b16 %v141, %v140
    %v155 = vpack.c.b16 %v143, %v142
    %v156 = vpack.c.b16 %v145, %v144
    %v157 = vpack.c.b16 %v147, %v146
    %v158 = vpack.c.b16 %v149, %v148
    %v159 = vpack.c.b16 %v151, %v150
    %168 = vmatpush.bf16.msra.mxu0 %v159
    %169 = vmatpush.bf16.msra.mxu0 %v158
    %170 = vmatpush.bf16.msra.mxu0 %v157
    %171 = vmatpush.bf16.msra.mxu0 %v156
    %172 = vmatpush.bf16.msra.mxu0 %v155
    %173 = vmatpush.bf16.msra.mxu0 %v154
    %174 = vmatpush.bf16.msra.mxu0 %v153
    %175 = vmatpush.bf16.msra.mxu0 %v152
    %176 = vmatmul.bf16.gmra.mxu0 %v118
    %v177 = vpop.f32.mrf.mxu0
    %v178 = vadd.f32 %v112, %v177
    %v179 = vpop.f32.mrf.mxu0
    %v180 = vadd.f32 %v112, %v179
    %181 = vdwg.mxu0
    %v182 = vmul.f32 %v178, 0.5
    %v183 = vmul.f32 %v180, 0.5
    %v184 = vmul.f32 %v178, 0.70710677
    %v185 = vmul.f32 %v180, 0.70710677
    %v186 = vmul.f32 %v184, %v184
    %v187 = vmin.f32 16.0, %v186
    %v188 = vmul.f32 %v187, 2.1237322e-06
    %v189 = vadd.f32 %v188, 0.00028619796
    %v190 = vmul.f32 %v187, %v189
    %v191 = vadd.f32 %v190, 0.0036580483
    %v192 = vmul.f32 %v187, %v191
    %v193 = vadd.f32 %v192, 0.05243302
    %v194 = vmul.f32 %v187, %v193
    %v195 = vadd.f32 %v194, 0.18741608
    %v196 = vmul.f32 %v187, %v195
    %v197 = vadd.f32 %v196, 1.1283791
    %v198 = vmul.f32 %v184, %v197
    %v199 = vmul.f32 %v187, 3.8918573e-05
    %v200 = vadd.f32 %v199, 0.001143296
    %v201 = vmul.f32 %v187, %v200
    %v202 = vadd.f32 %v201, 0.014752088
    %v203 = vmul.f32 %v187, %v202
    %v204 = vadd.f32 %v203, 0.112945676
    %v205 = vmul.f32 %v187, %v204
    %v206 = vadd.f32 %v205, 0.4994258
    %v207 = vmul.f32 %v187, %v206
    %v208 = vadd.f32 %v207, 1.0
    %v209 = vrcp.pop %v208
    %v210 = vmul.f32 %v208, %v209
    %v211 = vsub.f32 1.0, %v210
    %v212 = vmul.f32 %v209, %v211
    %v213 = vadd.f32 %v209, %v212
    %vm214 = vweird.f32 %v208
    %vm215 = vweird.f32 %v209
    %vm216 = vmor %vm214, %vm215
    %v217 = vsel %vm216, %v209, %v213
    %v218 = vand.u32 2147483647, %v208
    %vm219 = vcmp.eq.f32.partialorder %v218, 8.507059e+37
    %v220 = vand.u32 %v208, 2147483648
    %v221 = vor.u32 1.1754944e-38, %v220
    %v222 = vsel %vm219, %v221, %v217
    %v223 = vmul.f32 %v198, %v222
    %v224 = vmin.f32 %v223, 1.0
    %v225 = vmax.f32 %v224, -1.0
    %v226 = vmul.f32 %v185, %v185
    %v227 = vmin.f32 16.0, %v226
    %v228 = vmul.f32 %v227, 2.1237322e-06
    %v229 = vadd.f32 %v228, 0.00028619796
    %v230 = vmul.f32 %v227, %v229
    %v231 = vadd.f32 %v230, 0.0036580483
    %v232 = vmul.f32 %v227, %v231
    %v233 = vadd.f32 %v232, 0.05243302
    %v234 = vmul.f32 %v227, %v233
    %v235 = vadd.f32 %v234, 0.18741608
    %v236 = vmul.f32 %v227, %v235
    %v237 = vadd.f32 %v236, 1.1283791
    %v238 = vmul.f32 %v185, %v237
    %v239 = vmul.f32 %v227, 3.8918573e-05
    %v240 = vadd.f32 %v239, 0.001143296
    %v241 = vmul.f32 %v227, %v240
    %v242 = vadd.f32 %v241, 0.014752088
    %v243 = vmul.f32 %v227, %v242
    %v244 = vadd.f32 %v243, 0.112945676
    %v245 = vmul.f32 %v227, %v244
    %v246 = vadd.f32 %v245, 0.4994258
    %v247 = vmul.f32 %v227, %v246
    %v248 = vadd.f32 %v247, 1.0
    %v249 = vrcp.pop %v248
    %v250 = vmul.f32 %v248, %v249
    %v251 = vsub.f32 1.0, %v250
    %v252 = vmul.f32 %v249, %v251
    %v253 = vadd.f32 %v249, %v252
    %vm254 = vweird.f32 %v248
    %vm255 = vweird.f32 %v249
    %vm256 = vmor %vm254, %vm255
    %v257 = vsel %vm256, %v249, %v253
    %v258 = vand.u32 2147483647, %v248
    %vm259 = vcmp.eq.f32.partialorder %v258, 8.507059e+37
    %v260 = vand.u32 %v248, 2147483648
    %v261 = vor.u32 1.1754944e-38, %v260
    %v262 = vsel %vm259, %v261, %v257
    %v263 = vmul.f32 %v238, %v262
    %v264 = vmin.f32 %v263, 1.0
    %v265 = vmax.f32 %v264, -1.0
    %v266 = vadd.f32 %v225, 1.0
    %v267 = vadd.f32 %v265, 1.0
    %v268 = vmul.f32 %v182, %v266
    %v269 = vmul.f32 %v183, %v267
    %v270 = vadd.f32 %v268, %v92
    %v271 = vadd.f32 %v269, %v93
    %v272 = vpack.c.bf16 %v271, %v270
    %v273 = vld [vmem:[#allocation7] sm:$0xf]
    %v274 = vld [vmem:[#allocation7 + $0x4] sm:$0xf]
    %v275 = vld [vmem:[#allocation7 + $0x8] sm:$0xf]
    %v276 = vld [vmem:[#allocation7 + $0xc] sm:$0xf]
    %v277 = vld [vmem:[#allocation7 + $0x10] sm:$0xf]
    %v278 = vld [vmem:[#allocation7 + $0x14] sm:$0xf]
    %v279 = vld [vmem:[#allocation7 + $0x18] sm:$0xf]
    %v280 = vld [vmem:[#allocation7 + $0x1c] sm:$0xf]
    %v281 = vld [vmem:[#allocation7 + $0x20] sm:$0xf]
    %v282 = vld [vmem:[#allocation7 + $0x24] sm:$0xf]
    %v283 = vld [vmem:[#allocation7 + $0x28] sm:$0xf]
    %v284 = vld [vmem:[#allocation7 + $0x2c] sm:$0xf]
    %v285 = vld [vmem:[#allocation7 + $0x30] sm:$0xf]
    %v286 = vld [vmem:[#allocation7 + $0x34] sm:$0xf]
    %v287 = vld [vmem:[#allocation7 + $0x38] sm:$0xf]
    %v288 = vld [vmem:[#allocation7 + $0x3c] sm:$0xf]
    %v289 = vld [vmem:[%s4] sm:$0x1]
    %v291 = vperm.slane %v289, 0
    %v309 = vunpack.c.l.b16 %v273
    %v310 = vunpack.c.l.b16 %v274
    %v311 = vunpack.c.l.b16 %v275
    %v312 = vunpack.c.l.b16 %v276
    %v313 = vunpack.c.l.b16 %v277
    %v314 = vunpack.c.l.b16 %v278
    %v315 = vunpack.c.l.b16 %v279
    %v316 = vunpack.c.l.b16 %v280
    %v317 = vunpack.c.l.b16 %v281
    %v318 = vunpack.c.l.b16 %v282
    %v319 = vunpack.c.l.b16 %v283
    %v320 = vunpack.c.l.b16 %v284
    %v321 = vunpack.c.l.b16 %v285
    %v322 = vunpack.c.l.b16 %v286
    %v323 = vunpack.c.l.b16 %v287
    %v324 = vunpack.c.l.b16 %v288
    %v325 = vpack.c.b16 %v310, %v309
    %v326 = vpack.c.b16 %v312, %v311
    %v327 = vpack.c.b16 %v314, %v313
    %v328 = vpack.c.b16 %v316, %v315
    %v329 = vpack.c.b16 %v318, %v317
    %v330 = vpack.c.b16 %v320, %v319
    %v331 = vpack.c.b16 %v322, %v321
    %v332 = vpack.c.b16 %v324, %v323
    %341 = vmatpush.bf16.msra.mxu0 %v332
    %342 = vmatpush.bf16.msra.mxu0 %v331
    %343 = vmatpush.bf16.msra.mxu0 %v330
    %344 = vmatpush.bf16.msra.mxu0 %v329
    %345 = vmatpush.bf16.msra.mxu0 %v328
    %346 = vmatpush.bf16.msra.mxu0 %v327
    %347 = vmatpush.bf16.msra.mxu0 %v326
    %348 = vmatpush.bf16.msra.mxu0 %v325
    %349 = vmatmul.bf16.gmra.mxu0 %v272
    %v350 = vpop.f32.mrf.mxu0
    %v351 = vadd.f32 %v291, %v350
    %v352 = vpop.f32.mrf.mxu0
    %v353 = vadd.f32 %v291, %v352
    %354 = vdwg.mxu0
    %v355 = vmul.f32 %v351, 0.5
    %v356 = vmul.f32 %v353, 0.5
    %v357 = vmul.f32 %v351, 0.70710677
    %v358 = vmul.f32 %v353, 0.70710677
    %v359 = vmul.f32 %v357, %v357
    %v360 = vmin.f32 16.0, %v359
    %v361 = vmul.f32 %v360, 2.1237322e-06
    %v362 = vadd.f32 %v361, 0.00028619796
    %v363 = vmul.f32 %v360, %v362
    %v364 = vadd.f32 %v363, 0.0036580483
    %v365 = vmul.f32 %v360, %v364
    %v366 = vadd.f32 %v365, 0.05243302
    %v367 = vmul.f32 %v360, %v366
    %v368 = vadd.f32 %v367, 0.18741608
    %v369 = vmul.f32 %v360, %v368
    %v370 = vadd.f32 %v369, 1.1283791
    %v371 = vmul.f32 %v357, %v370
    %v372 = vmul.f32 %v360, 3.8918573e-05
    %v373 = vadd.f32 %v372, 0.001143296
    %v374 = vmul.f32 %v360, %v373
    %v375 = vadd.f32 %v374, 0.014752088
    %v376 = vmul.f32 %v360, %v375
    %v377 = vadd.f32 %v376, 0.112945676
    %v378 = vmul.f32 %v360, %v377
    %v379 = vadd.f32 %v378, 0.4994258
    %v380 = vmul.f32 %v360, %v379
    %v381 = vadd.f32 %v380, 1.0
    %v382 = vrcp.pop %v381
    %v383 = vmul.f32 %v381, %v382
    %v384 = vsub.f32 1.0, %v383
    %v385 = vmul.f32 %v382, %v384
    %v386 = vadd.f32 %v382, %v385
    %vm387 = vweird.f32 %v381
    %vm388 = vweird.f32 %v382
    %vm389 = vmor %vm387, %vm388
    %v390 = vsel %vm389, %v382, %v386
    %v391 = vand.u32 2147483647, %v381
    %vm392 = vcmp.eq.f32.partialorder %v391, 8.507059e+37
    %v393 = vand.u32 %v381, 2147483648
    %v394 = vor.u32 1.1754944e-38, %v393
    %v395 = vsel %vm392, %v394, %v390
    %v396 = vmul.f32 %v371, %v395
    %v397 = vmin.f32 %v396, 1.0
    %v398 = vmax.f32 %v397, -1.0
    %v399 = vmul.f32 %v358, %v358
    %v400 = vmin.f32 16.0, %v399
    %v401 = vmul.f32 %v400, 2.1237322e-06
    %v402 = vadd.f32 %v401, 0.00028619796
    %v403 = vmul.f32 %v400, %v402
    %v404 = vadd.f32 %v403, 0.0036580483
    %v405 = vmul.f32 %v400, %v404
    %v406 = vadd.f32 %v405, 0.05243302
    %v407 = vmul.f32 %v400, %v406
    %v408 = vadd.f32 %v407, 0.18741608
    %v409 = vmul.f32 %v400, %v408
    %v410 = vadd.f32 %v409, 1.1283791
    %v411 = vmul.f32 %v358, %v410
    %v412 = vmul.f32 %v400, 3.8918573e-05
    %v413 = vadd.f32 %v412, 0.001143296
    %v414 = vmul.f32 %v400, %v413
    %v415 = vadd.f32 %v414, 0.014752088
    %v416 = vmul.f32 %v400, %v415
    %v417 = vadd.f32 %v416, 0.112945676
    %v418 = vmul.f32 %v400, %v417
    %v419 = vadd.f32 %v418, 0.4994258
    %v420 = vmul.f32 %v400, %v419
    %v421 = vadd.f32 %v420, 1.0
    %v422 = vrcp.pop %v421
    %v423 = vmul.f32 %v421, %v422
    %v424 = vsub.f32 1.0, %v423
    %v425 = vmul.f32 %v422, %v424
    %v426 = vadd.f32 %v422, %v425
    %vm427 = vweird.f32 %v421
    %vm428 = vweird.f32 %v422
    %vm429 = vmor %vm427, %vm428
    %v430 = vsel %vm429, %v422, %v426
    %v431 = vand.u32 2147483647, %v421
    %vm432 = vcmp.eq.f32.partialorder %v431, 8.507059e+37
    %v433 = vand.u32 %v421, 2147483648
    %v434 = vor.u32 1.1754944e-38, %v433
    %v435 = vsel %vm432, %v434, %v430
    %v436 = vmul.f32 %v411, %v435
    %v437 = vmin.f32 %v436, 1.0
    %v438 = vmax.f32 %v437, -1.0
    %v439 = vadd.f32 %v398, 1.0
    %v440 = vadd.f32 %v438, 1.0
    %v441 = vmul.f32 %v355, %v439
    %v442 = vmul.f32 %v356, %v440
    %v443 = vadd.f32 %v441, %v270
    %v444 = vadd.f32 %v442, %v271
    %v445 = vpack.c.bf16 %v444, %v443
    %v446 = vld [vmem:[#allocation8] sm:$0xf]
    %v447 = vld [vmem:[#allocation8 + $0x4] sm:$0xf]
    %v448 = vld [vmem:[#allocation8 + $0x8] sm:$0xf]
    %v449 = vld [vmem:[#allocation8 + $0xc] sm:$0xf]
    %v450 = vld [vmem:[#allocation8 + $0x10] sm:$0xf]
    %v451 = vld [vmem:[#allocation8 + $0x14] sm:$0xf]
    %v452 = vld [vmem:[#allocation8 + $0x18] sm:$0xf]
    %v453 = vld [vmem:[#allocation8 + $0x1c] sm:$0xf]
    %v454 = vld [vmem:[#allocation8 + $0x20] sm:$0xf]
    %v455 = vld [vmem:[#allocation8 + $0x24] sm:$0xf]
    %v456 = vld [vmem:[#allocation8 + $0x28] sm:$0xf]
    %v457 = vld [vmem:[#allocation8 + $0x2c] sm:$0xf]
    %v458 = vld [vmem:[#allocation8 + $0x30] sm:$0xf]
    %v459 = vld [vmem:[#allocation8 + $0x34] sm:$0xf]
    %v460 = vld [vmem:[#allocation8 + $0x38] sm:$0xf]
    %v461 = vld [vmem:[#allocation8 + $0x3c] sm:$0xf]
    %v462 = vld [vmem:[%s6] sm:$0x1]
    %v464 = vperm.slane %v462, 0
    %v482 = vunpack.c.l.b16 %v446
    %v483 = vunpack.c.l.b16 %v447
    %v484 = vunpack.c.l.b16 %v448
    %v485 = vunpack.c.l.b16 %v449
    %v486 = vunpack.c.l.b16 %v450
    %v487 = vunpack.c.l.b16 %v451
    %v488 = vunpack.c.l.b16 %v452
    %v489 = vunpack.c.l.b16 %v453
    %v490 = vunpack.c.l.b16 %v454
    %v491 = vunpack.c.l.b16 %v455
    %v492 = vunpack.c.l.b16 %v456
    %v493 = vunpack.c.l.b16 %v457
    %v494 = vunpack.c.l.b16 %v458
    %v495 = vunpack.c.l.b16 %v459
    %v496 = vunpack.c.l.b16 %v460
    %v497 = vunpack.c.l.b16 %v461
    %v498 = vpack.c.b16 %v483, %v482
    %v499 = vpack.c.b16 %v485, %v484
    %v500 = vpack.c.b16 %v487, %v486
    %v501 = vpack.c.b16 %v489, %v488
    %v502 = vpack.c.b16 %v491, %v490
    %v503 = vpack.c.b16 %v493, %v492
    %v504 = vpack.c.b16 %v495, %v494
    %v505 = vpack.c.b16 %v497, %v496
    %514 = vmatpush.bf16.msra.mxu0 %v505
    %515 = vmatpush.bf16.msra.mxu0 %v504
    %516 = vmatpush.bf16.msra.mxu0 %v503
    %517 = vmatpush.bf16.msra.mxu0 %v502
    %518 = vmatpush.bf16.msra.mxu0 %v501
    %519 = vmatpush.bf16.msra.mxu0 %v500
    %520 = vmatpush.bf16.msra.mxu0 %v499
    %521 = vmatpush.bf16.msra.mxu0 %v498
    %522 = vmatmul.bf16.gmra.mxu0 %v445
    %v523 = vpop.f32.mrf.mxu0
    %v524 = vadd.f32 %v464, %v523
    %v525 = vpop.f32.mrf.mxu0
    %v526 = vadd.f32 %v464, %v525
    %527 = vdwg.mxu0
    %528 = vst [vmem:[#allocation10] sm:$0xff] %v524
    %529 = vst [vmem:[#allocation10 + $0x8] sm:$0xff] %v526
    // Predicated region
    $region46: #{tpu_custom_call.1} parent=1 // pred_check
      _
    $region47: #{tpu_custom_call.1} parent=1 // pred_check_branch
      %531 = sbr.rel (0) target = $region49
    $region48: #{tpu_custom_call.1} parent=1 // pred_region
      %533 = vsyncadd [#allocation4], 0
      %s534 = sshll.u32 [#allocation10], 4
      %s535 = int_to_ptr.vmem [resolvable:$true] %s534
      %s536 = sshll.u32 %s7, 4
      %s537 = int_to_ptr.hbm [resolvable:$true] %s536
      %542 = dma.vmem_to_hbm [thread:$0]  %s535, 256, %s537, [#allocation4], 128, 128, 8
    $region49: #{tpu_custom_call.1} parent=1 // pred_fallthru
      _
    // Predicated region
    $region50: #{tpu_custom_call.1} parent=1 // pred_check
      _
    $region51: #{tpu_custom_call.1} parent=1 // pred_check_branch
      %544 = sbr.rel (0) target = $region53
    $region52: #{tpu_custom_call.1} parent=1 // pred_region
      %546 = dma.done [#allocation4], 256
    $region53: #{tpu_custom_call.1} parent=1 // pred_fallthru
      _
    %547 = vsyncpa [#allocation3], 1
    %548 = vsyncpa [#allocation6], 1
    %549 = vsyncpa [#allocation9], 1
    %550 = vsyncpa [#allocation4], 1

</llo_original>
